<compile_context>
chip_gen: v7x
topology: tpu7x:2x2x1
jax: 0.10.0
libtpu: 0.0.40
codegen_flags: <defaults>
</compile_context>

<pallas_src>
import functools

import jax
import jax.numpy as jnp
from jax.experimental import pallas as pl
from jax.experimental.pallas import tpu as pltpu

_MIB = 1024 * 1024


def _cdiv(a, b):
    return -(-a // b)


def _round_up(x, m):
    return ((x + m - 1) // m) * m


def _round_down(x, m):
    return (x // m) * m


# ----------------------------- Pallas kernels ------------------------------

def _mlp_kernel(x_ref, w1_ref, b1_ref, w2_ref, b2_ref, o_ref):
    # fc1: (TB, In) @ (In, H) + (1, H)   -- weights already (in, out): no .T
    h = jnp.dot(x_ref[...], w1_ref[...],
                preferred_element_type=jnp.float32) + b1_ref[...]
    h = jnp.tanh(h)
    # fc2: (TB, H) @ (H, C) + (1, C)
    out = jnp.dot(h, w2_ref[...],
                  preferred_element_type=jnp.float32) + b2_ref[...]
    o_ref[...] = out.astype(o_ref.dtype)


def _linear_kernel(x_ref, w_ref, b_ref, o_ref):
    out = jnp.dot(x_ref[...], w_ref[...],
                  preferred_element_type=jnp.float32) + b_ref[...]
    o_ref[...] = out.astype(o_ref.dtype)


# ------------------------------ Param handling ------------------------------

def init_params(key, input_size, hidden_size, num_classes, net_type):
    """PyTorch-style layout mirroring nn.Linear: W (out, in), b (out,)."""
    k1, k2, k3, k4 = jax.random.split(key, 4)
    if net_type == "MLP":
        w1 = jax.random.normal(k1, (hidden_size, input_size), jnp.float32) * 0.1
        b1 = jax.random.normal(k2, (hidden_size,), jnp.float32) * 0.1
        w2 = jax.random.normal(k3, (num_classes, hidden_size), jnp.float32) * 0.1
        b2 = jax.random.normal(k4, (num_classes,), jnp.float32) * 0.1
        return (w1, b1, w2, b2)
    elif net_type == "Linear":
        w1 = jax.random.normal(k1, (num_classes, input_size), jnp.float32) * 0.1
        b1 = jax.random.normal(k2, (num_classes,), jnp.float32) * 0.1
        return (w1, b1)
    raise ValueError(f"unknown net_type: {net_type}")


def prepare_params(params, net_type):
    """One-time layout plumbing: transpose to (in, out); biases as (1, out).
    No zero-padding of class/hidden dims (the kernel handles the true shapes;
    padding only added HBM/VMEM bytes on this bandwidth-bound kernel)."""
    if net_type == "MLP":
        w1, b1, w2, b2 = params
        return (w1.T, b1.reshape(1, -1), w2.T, b2.reshape(1, -1))
    elif net_type == "Linear":
        w, b = params
        return (w.T, b.reshape(1, -1))
    raise ValueError(f"unknown net_type: {net_type}")


# --------------------------- Tile / VMEM planning ----------------------------

def _vmem_budget_bytes():
    """Scoped-VMEM budget we are willing to request (generation aware)."""
    try:
        kind = jax.devices()[0].device_kind.lower()
    except Exception:
        kind = ""
    if ("v5" in kind) or ("v6" in kind):
        return 96 * _MIB          # 128 MiB physical VMEM on v5e / v6e
    return 48 * _MIB              # conservative: fits v7x's 64 MiB per TC


def _choose_tb(batch, input_size, hidden, num_classes, weight_bytes, budget):
    """Batch-tile size derived from the VMEM budget; keeps >=2 grid steps when
    there is enough work so the 'parallel' axis can use both TCs on v7x."""
    # Bytes per batch row: double-buffered x and out tiles + fused hidden
    # activation and f32 output temp (single-buffered).
    per_row = 4 * (2 * input_size + 2 * num_classes + hidden + num_classes)
    tile_budget = max(budget - 2 * weight_bytes - 4 * _MIB, 2 * _MIB)
    cap = min(tile_budget // per_row, 4096)
    if cap >= 512:
        cap = _round_down(cap, 256)
    else:
        cap = max(_round_down(cap, 8), 8)
    if batch < 8:
        return batch              # single full block (== full dim, legal)
    half = _round_up(_cdiv(batch, 2), 8)   # target: at least 2 grid steps
    return max(8, min(cap, half))


# ------------------------------ Host wrapper --------------------------------

@functools.partial(jax.jit, static_argnames=("net_type",))
def classifier_forward(x, prepared_params, net_type):
    batch, input_size = x.shape

    if net_type == "MLP":
        w1, b1, w2, b2 = prepared_params
        hidden = w1.shape[1]
        num_classes = w2.shape[1]
        kernel = _mlp_kernel
        weights = (w1, b1, w2, b2)
    elif net_type == "Linear":
        w, b = prepared_params
        hidden = 0
        num_classes = w.shape[1]
        kernel = _linear_kernel
        weights = (w, b)
    else:
        raise ValueError(f"unknown net_type: {net_type}")

    weight_bytes = sum(int(a.size) * a.dtype.itemsize for a in weights)
    budget = _vmem_budget_bytes()
    tb = _choose_tb(batch, input_size, hidden, num_classes, weight_bytes, budget)
    grid = (_cdiv(batch, tb),)

    # Weights stay VMEM-resident across the grid (constant index_map); count
    # them at 2x in the budget (default double-buffering of inputs).
    weight_specs = [pl.BlockSpec(a.shape, lambda i: (0, 0)) for a in weights]

    need = (2 * weight_bytes
            + 2 * 4 * tb * (input_size + num_classes)      # x/out double-buffered
            + 4 * tb * (hidden + num_classes))             # fused intermediates
    vmem_limit = int(min(budget, max(int(1.5 * need) + 2 * _MIB, 8 * _MIB)))

    return pl.pallas_call(
        kernel,
        out_shape=jax.ShapeDtypeStruct((batch, num_classes), x.dtype),
        grid=grid,
        in_specs=[pl.BlockSpec((tb, input_size), lambda i: (i, 0))] + weight_specs,
        out_specs=pl.BlockSpec((tb, num_classes), lambda i: (i, 0)),
        compiler_params=pltpu.CompilerParams(
            dimension_semantics=("parallel",),
            vmem_limit_bytes=vmem_limit,
        ),
    )(x, *weights)


# ----------------------------------- main ------------------------------------

if __name__ == "__main__":
    key = jax.random.PRNGKey(0)
    kx1, kx2, kp_mlp, kp_lin = jax.random.split(key, 4)

    input_size, hidden_size, num_classes = 32, 64, 16

    # --- MLP variant ---
    batch = 8
    x = jax.random.normal(kx1, (batch, input_size), jnp.float32)
    params_mlp = init_params(kp_mlp, input_size, hidden_size, num_classes, "MLP")
    prep_mlp = prepare_params(params_mlp, "MLP")
    out_mlp = jax.block_until_ready(classifier_forward(x, prep_mlp, "MLP"))

    w1, b1, w2, b2 = params_mlp
    ref_mlp = jnp.tanh(x @ w1.T + b1) @ w2.T + b2
    assert out_mlp.shape == (batch, num_classes)
    assert jnp.allclose(out_mlp, ref_mlp, atol=1e-5, rtol=1e-5)

    # --- MLP variant, ragged batch (exercises cdiv grid / partial tail block) ---
    batch2 = 13
    x2 = jax.random.normal(kx2, (batch2, input_size), jnp.float32)
    out_mlp2 = jax.block_until_ready(classifier_forward(x2, prep_mlp, "MLP"))
    ref_mlp2 = jnp.tanh(x2 @ w1.T + b1) @ w2.T + b2
    assert out_mlp2.shape == (batch2, num_classes)
    assert jnp.allclose(out_mlp2, ref_mlp2, atol=1e-5, rtol=1e-5)

    # --- Linear variant ---
    params_lin = init_params(kp_lin, input_size, hidden_size, num_classes, "Linear")
    prep_lin = prepare_params(params_lin, "Linear")
    out_lin = jax.block_until_ready(classifier_forward(x, prep_lin, "Linear"))

    wl, bl = params_lin
    ref_lin = x @ wl.T + bl
    assert out_lin.shape == (batch, num_classes)
    assert jnp.allclose(out_lin, ref_lin, atol=1e-5, rtol=1e-5)

    print("KERNEL_OK")
</pallas_src>

<mosaic_0001>
module attributes {stable_mosaic.version = 11 : i64} {
  func.func @_mlp_kernel(%arg0: i32, %arg1: memref<8x32xf32, #tpu.memory_space<vmem>>, %arg2: memref<32x64xf32, #tpu.memory_space<vmem>>, %arg3: memref<1x64xf32, #tpu.memory_space<vmem>>, %arg4: memref<64x16xf32, #tpu.memory_space<vmem>>, %arg5: memref<1x16xf32, #tpu.memory_space<vmem>>, %arg6: memref<8x16xf32, #tpu.memory_space<vmem>>) attributes {dimension_semantics = [#tpu.dimension_semantics<parallel>], iteration_bounds = array<i64: 1>, scalar_prefetch = 0 : i64, scratch_operands = 0 : i64, tpu.core_type = #tpu.core_type<tc>, window_params = [{transform_indices = @transform_0, window_bounds = array<i64: 8, 32>}, {pipeline_mode = #tpu.pipeline_mode<synchronous>, transform_indices = @transform_1, window_bounds = array<i64: 32, 64>}, {pipeline_mode = #tpu.pipeline_mode<synchronous>, transform_indices = @transform_2, window_bounds = array<i64: 1, 64>}, {pipeline_mode = #tpu.pipeline_mode<synchronous>, transform_indices = @transform_3, window_bounds = array<i64: 64, 16>}, {pipeline_mode = #tpu.pipeline_mode<synchronous>, transform_indices = @transform_4, window_bounds = array<i64: 1, 16>}, {transform_indices = @transform_5, window_bounds = array<i64: 8, 16>}]} {
    %c0 = arith.constant 0 : index
    %c0_0 = arith.constant 0 : index
    %0 = vector.load %arg1[%c0, %c0_0] : memref<8x32xf32, #tpu.memory_space<vmem>>, vector<8x32xf32>
    %c0_1 = arith.constant 0 : index
    %c0_2 = arith.constant 0 : index
    %1 = vector.load %arg2[%c0_1, %c0_2] : memref<32x64xf32, #tpu.memory_space<vmem>>, vector<32x64xf32>
    %cst = arith.constant dense<0.000000e+00> : vector<8x64xf32>
    %2 = tpu.matmul %0, %1, %cst {dimension_numbers = #tpu.dot_dimension_numbers<[1], [0], [0], [1], [0, 0, 1, 1], [], []>} : vector<8x32xf32>, vector<32x64xf32>, vector<8x64xf32> -> vector<8x64xf32>
    %c0_3 = arith.constant 0 : index
    %c0_4 = arith.constant 0 : index
    %3 = vector.load %arg3[%c0_3, %c0_4] : memref<1x64xf32, #tpu.memory_space<vmem>>, vector<1x64xf32>
    %4 = vector.broadcast %3 : vector<1x64xf32> to vector<8x64xf32>
    %5 = arith.addf %2, %4 : vector<8x64xf32>
    %6 = math.tanh %5 : vector<8x64xf32>
    %c0_5 = arith.constant 0 : index
    %c0_6 = arith.constant 0 : index
    %7 = vector.load %arg4[%c0_5, %c0_6] : memref<64x16xf32, #tpu.memory_space<vmem>>, vector<64x16xf32>
    %cst_7 = arith.constant dense<0.000000e+00> : vector<8x16xf32>
    %8 = tpu.matmul %6, %7, %cst_7 {dimension_numbers = #tpu.dot_dimension_numbers<[1], [0], [0], [1], [0, 0, 1, 1], [], []>} : vector<8x64xf32>, vector<64x16xf32>, vector<8x16xf32> -> vector<8x16xf32>
    %c0_8 = arith.constant 0 : index
    %c0_9 = arith.constant 0 : index
    %9 = vector.load %arg5[%c0_8, %c0_9] : memref<1x16xf32, #tpu.memory_space<vmem>>, vector<1x16xf32>
    %10 = vector.broadcast %9 : vector<1x16xf32> to vector<8x16xf32>
    %11 = arith.addf %8, %10 : vector<8x16xf32>
    %c0_10 = arith.constant 0 : index
    %c0_11 = arith.constant 0 : index
    %12 = vector.load %arg6[%c0_10, %c0_11] : memref<8x16xf32, #tpu.memory_space<vmem>>, vector<8x16xf32>
    tpu.vector_store %arg6[%c0_10, %c0_11], %11 {strides = array<i32>} : memref<8x16xf32, #tpu.memory_space<vmem>>, vector<8x16xf32>,
    return
  }
  func.func @transform_0(%arg0: i32) -> (i32, i32) {
    %c0_i32 = arith.constant 0 : i32
    %c0_i32_0 = arith.constant 0 : i32
    return %arg0, %c0_i32 : i32, i32
  }
  func.func @transform_1(%arg0: i32) -> (i32, i32) {
    %c0_i32 = arith.constant 0 : i32
    %c0_i32_0 = arith.constant 0 : i32
    %c0_i32_1 = arith.constant 0 : i32
    return %c0_i32, %c0_i32_0 : i32, i32
  }
  func.func @transform_2(%arg0: i32) -> (i32, i32) {
    %c0_i32 = arith.constant 0 : i32
    %c0_i32_0 = arith.constant 0 : i32
    %c0_i32_1 = arith.constant 0 : i32
    return %c0_i32, %c0_i32_0 : i32, i32
  }
  func.func @transform_3(%arg0: i32) -> (i32, i32) {
    %c0_i32 = arith.constant 0 : i32
    %c0_i32_0 = arith.constant 0 : i32
    %c0_i32_1 = arith.constant 0 : i32
    return %c0_i32, %c0_i32_0 : i32, i32
  }
  func.func @transform_4(%arg0: i32) -> (i32, i32) {
    %c0_i32 = arith.constant 0 : i32
    %c0_i32_0 = arith.constant 0 : i32
    %c0_i32_1 = arith.constant 0 : i32
    return %c0_i32, %c0_i32_0 : i32, i32
  }
  func.func @transform_5(%arg0: i32) -> (i32, i32) {
    %c0_i32 = arith.constant 0 : i32
    %c0_i32_0 = arith.constant 0 : i32
    return %arg0, %c0_i32 : i32, i32
  }
}

</mosaic_0001>

<llo_original>
// kernel: classifier_forward.1
$region0: #{classifier_forward.1}
  #allocation0 [shape = 'u32[]', space=smem, size = 0x4, offset = 0x4, fixed_abs, tag = 'smem constant byte address 0x4 - core index']
  #allocation1 [shape = 'u32[144,128]{1,0:T(1,128)}', space=vmem, size = 0x12000, scoped, tag = 'internal scratch']
  %s0 = inlined_call_operand.vmem [shape: f32[8,32], index: 0, kind: input, shape index: {}]
  %s1 = inlined_call_operand.vmem [shape: f32[32,64], index: 1, kind: input, shape index: {}]
  %s2 = inlined_call_operand.vmem [shape: f32[1,64], index: 2, kind: input, shape index: {}]
  %s3 = inlined_call_operand.vmem [shape: f32[64,16], index: 3, kind: input, shape index: {}]
  %s4 = inlined_call_operand.vmem [shape: f32[1,16], index: 4, kind: input, shape index: {}]
  %s5 = inlined_call_operand.hbm [shape: f32[8,16], index: 5, kind: output, shape index: {}]
  %s6 = sld [smem:[#allocation0]]
  $region30: #{classifier_forward.1} parent=0
    _
  %s8 = ssub.s32 1, %s6
  %s9 = scalar_select 0, %s8, %s6
  $region1: #{classifier_forward.1} parent=0
    #allocation2 [shape = 'u8[4096]{0}', space=vmem, size = 0x1000, scoped, tag = 'output window, operand 0, single buffered']
    #allocation3 [shape = 's32[1]{0}', space=sflag, size = 0x4, scoped, tag = 'scoped memory for classifier_forward.1']
    %10 = vsyncpa [#allocation3], 0
    // Predicated region
    $region2: #{classifier_forward.1} parent=1 // pred_check
      _
    $region3: #{classifier_forward.1} parent=1 // pred_check_branch
      %12 = sbr.rel (0) target = $region5
    $region4: #{classifier_forward.1} parent=1 // pred_region
      _
    $region5: #{classifier_forward.1} parent=1 // pred_fallthru
      _
    // Predicated region
    $region6: #{classifier_forward.1} parent=1 // pred_check
      _
    $region7: #{classifier_forward.1} parent=1 // pred_check_branch
      %14 = sbr.rel (0) target = $region9
    $region8: #{classifier_forward.1} parent=1 // pred_region
      _
    $region9: #{classifier_forward.1} parent=1 // pred_fallthru
      _
    // Predicated region
    $region10: #{classifier_forward.1} parent=1 // pred_check
      _
    $region11: #{classifier_forward.1} parent=1 // pred_check_branch
      %16 = sbr.rel (0) target = $region13
    $region12: #{classifier_forward.1} parent=1 // pred_region
      _
    $region13: #{classifier_forward.1} parent=1 // pred_fallthru
      _
    // Predicated region
    $region14: #{classifier_forward.1} parent=1 // pred_check
      _
    $region15: #{classifier_forward.1} parent=1 // pred_check_branch
      %18 = sbr.rel (0) target = $region17
    $region16: #{classifier_forward.1} parent=1 // pred_region
      _
    $region17: #{classifier_forward.1} parent=1 // pred_fallthru
      _
    // Predicated region
    $region18: #{classifier_forward.1} parent=1 // pred_check
      _
    $region19: #{classifier_forward.1} parent=1 // pred_check_branch
      %20 = sbr.rel (0) target = $region21
    $region20: #{classifier_forward.1} parent=1 // pred_region
      _
    $region21: #{classifier_forward.1} parent=1 // pred_fallthru
      _
    %v21 = vld [vmem:[%s0] sm:$0xff]
    %v22 = vld [vmem:[%s1] sm:$0xff]
    %v23 = vld [vmem:[%s1 + $0x8] sm:$0xff]
    %v24 = vld [vmem:[%s1 + $0x10] sm:$0xff]
    %v25 = vld [vmem:[%s1 + $0x18] sm:$0xff]
    %v26 = vld [vmem:[%s2] sm:$0x1]
    %v28 = vlaneseq
    %v29 = vshrl.u32 %v28, 7
    %v30 = vsub.s32 0, %v29
    %v31 = vrot.slane %v26, %v30
    %vm33 = vcmask 261120
    %v35 = vsel %vm33, %v21, 0
    %37 = vmatprep.subr.mxu0 0.0
    %38 = vmatpush1.msra.mxu0 %v22
    %39 = vmatprep.subr.mxu0 0.0
    %40 = vmatpush1.msra.mxu0 %v23
    %41 = vmatprep.subr.mxu0 0.0
    %42 = vmatpush1.msra.mxu0 %v24
    %43 = vmatprep.subr.mxu0 0.0
    %44 = vmatpush1.msra.mxu0 %v25
    %45 = vmatprep.subr.mxu0 0.0
    %46 = vmatpush1.msra.mxu0 0.0
    %47 = vmatprep.subr.mxu0 0.0
    %48 = vmatpush1.msra.mxu0 0.0
    %49 = vmatprep.subr.mxu0 0.0
    %50 = vmatpush1.msra.mxu0 0.0
    %51 = vmatprep.subr.mxu0 0.0
    %52 = vmatpush1.msra.mxu0 0.0
    %53 = vmatprep.subr.mxu0 0.0
    %54 = vmatpush1.msra.mxu0 0.0
    %55 = vmatprep.subr.mxu0 0.0
    %56 = vmatpush1.msra.mxu0 0.0
    %57 = vmatprep.subr.mxu0 0.0
    %58 = vmatpush1.msra.mxu0 0.0
    %59 = vmatprep.subr.mxu0 0.0
    %60 = vmatpush1.msra.mxu0 0.0
    %61 = vmatprep.subr.mxu0 0.0
    %62 = vmatpush1.msra.mxu0 0.0
    %63 = vmatprep.subr.mxu0 0.0
    %64 = vmatpush1.msra.mxu0 0.0
    %65 = vmatprep.subr.mxu0 0.0
    %66 = vmatpush1.msra.mxu0 0.0
    %67 = vmatprep.subr.mxu0 0.0
    %68 = vmatpush1.msra.mxu0 0.0
    %69 = vmatprep.subr.mxu0 0.0
    %70 = vmatpush1.msra.mxu0 0.0
    %71 = vmatprep.subr.mxu0 0.0
    %72 = vmatpush1.msra.mxu0 0.0
    %73 = vmatprep.subr.mxu0 0.0
    %74 = vmatpush1.msra.mxu0 0.0
    %75 = vmatprep.subr.mxu0 0.0
    %76 = vmatpush1.msra.mxu0 0.0
    %77 = vmatprep.subr.mxu0 0.0
    %78 = vmatpush1.msra.mxu0 0.0
    %79 = vmatprep.subr.mxu0 0.0
    %80 = vmatpush1.msra.mxu0 0.0
    %81 = vmatprep.subr.mxu0 0.0
    %82 = vmatpush1.msra.mxu0 0.0
    %83 = vmatprep.subr.mxu0 0.0
    %84 = vmatpush1.msra.mxu0 0.0
    %85 = vmatprep.subr.mxu0 0.0
    %86 = vmatpush1.msra.mxu0 0.0
    %87 = vmatprep.subr.mxu0 0.0
    %88 = vmatpush1.msra.mxu0 0.0
    %89 = vmatprep.subr.mxu0 0.0
    %90 = vmatpush1.msra.mxu0 0.0
    %91 = vmatprep.subr.mxu0 0.0
    %92 = vmatpush1.msra.mxu0 0.0
    %93 = vmatprep.subr.mxu0 0.0
    %94 = vmatpush1.msra.mxu0 0.0
    %95 = vmatprep.subr.mxu0 0.0
    %96 = vmatpush1.msra.mxu0 0.0
    %97 = vmatprep.subr.mxu0 0.0
    %98 = vmatpush1.msra.mxu0 0.0
    %99 = vmatprep.subr.mxu0 0.0
    %100 = vmatpush1.msra.mxu0 0.0
    %101 = vmatprep.mubr.f32.mxu0 0.0
    %102 = vmatmul.mubr.f32.gmra.mrb[0].mxu0 %v35
    %v103 = vpop.f32.mrb[0].mxu0
    %v104 = vadd.f32 %v31, %v103
    %v105 = vpop.f32.mrb[0].mxu0
    %106 = vdwg.mxu0
    %v107 = vtanh.pop %v104
    %v108 = vld [vmem:[%s3] sm:$0xff]
    %v109 = vld [vmem:[%s3 + $0x8] sm:$0xff]
    %v110 = vld [vmem:[%s3 + $0x10] sm:$0xff]
    %v111 = vld [vmem:[%s3 + $0x18] sm:$0xff]
    %v112 = vld [vmem:[%s3 + $0x20] sm:$0xff]
    %v113 = vld [vmem:[%s3 + $0x28] sm:$0xff]
    %v114 = vld [vmem:[%s3 + $0x30] sm:$0xff]
    %v115 = vld [vmem:[%s3 + $0x38] sm:$0xff]
    %v116 = vld [vmem:[%s4] sm:$0x1]
    %v118 = vlaneseq
    %v119 = vshrl.u32 %v118, 7
    %v120 = vsub.s32 0, %v119
    %v121 = vrot.slane %v116, %v120
    %vm123 = vcmask 523264
    %v125 = vsel %vm123, %v107, 0
    %127 = vmatprep.subr.mxu0 0.0
    %128 = vmatpush1.msra.mxu0 %v108
    %129 = vmatprep.subr.mxu0 0.0
    %130 = vmatpush1.msra.mxu0 %v109
    %131 = vmatprep.subr.mxu0 0.0
    %132 = vmatpush1.msra.mxu0 %v110
    %133 = vmatprep.subr.mxu0 0.0
    %134 = vmatpush1.msra.mxu0 %v111
    %135 = vmatprep.subr.mxu0 0.0
    %136 = vmatpush1.msra.mxu0 %v112
    %137 = vmatprep.subr.mxu0 0.0
    %138 = vmatpush1.msra.mxu0 %v113
    %139 = vmatprep.subr.mxu0 0.0
    %140 = vmatpush1.msra.mxu0 %v114
    %141 = vmatprep.subr.mxu0 0.0
    %142 = vmatpush1.msra.mxu0 %v115
    %143 = vmatprep.subr.mxu0 0.0
    %144 = vmatpush1.msra.mxu0 0.0
    %145 = vmatprep.subr.mxu0 0.0
    %146 = vmatpush1.msra.mxu0 0.0
    %147 = vmatprep.subr.mxu0 0.0
    %148 = vmatpush1.msra.mxu0 0.0
    %149 = vmatprep.subr.mxu0 0.0
    %150 = vmatpush1.msra.mxu0 0.0
    %151 = vmatprep.subr.mxu0 0.0
    %152 = vmatpush1.msra.mxu0 0.0
    %153 = vmatprep.subr.mxu0 0.0
    %154 = vmatpush1.msra.mxu0 0.0
    %155 = vmatprep.subr.mxu0 0.0
    %156 = vmatpush1.msra.mxu0 0.0
    %157 = vmatprep.subr.mxu0 0.0
    %158 = vmatpush1.msra.mxu0 0.0
    %159 = vmatprep.subr.mxu0 0.0
    %160 = vmatpush1.msra.mxu0 0.0
    %161 = vmatprep.subr.mxu0 0.0
    %162 = vmatpush1.msra.mxu0 0.0
    %163 = vmatprep.subr.mxu0 0.0
    %164 = vmatpush1.msra.mxu0 0.0
    %165 = vmatprep.subr.mxu0 0.0
    %166 = vmatpush1.msra.mxu0 0.0
    %167 = vmatprep.subr.mxu0 0.0
    %168 = vmatpush1.msra.mxu0 0.0
    %169 = vmatprep.subr.mxu0 0.0
    %170 = vmatpush1.msra.mxu0 0.0
    %171 = vmatprep.subr.mxu0 0.0
    %172 = vmatpush1.msra.mxu0 0.0
    %173 = vmatprep.subr.mxu0 0.0
    %174 = vmatpush1.msra.mxu0 0.0
    %175 = vmatprep.subr.mxu0 0.0
    %176 = vmatpush1.msra.mxu0 0.0
    %177 = vmatprep.subr.mxu0 0.0
    %178 = vmatpush1.msra.mxu0 0.0
    %179 = vmatprep.subr.mxu0 0.0
    %180 = vmatpush1.msra.mxu0 0.0
    %181 = vmatprep.subr.mxu0 0.0
    %182 = vmatpush1.msra.mxu0 0.0
    %183 = vmatprep.subr.mxu0 0.0
    %184 = vmatpush1.msra.mxu0 0.0
    %185 = vmatprep.subr.mxu0 0.0
    %186 = vmatpush1.msra.mxu0 0.0
    %187 = vmatprep.subr.mxu0 0.0
    %188 = vmatpush1.msra.mxu0 0.0
    %189 = vmatprep.subr.mxu0 0.0
    %190 = vmatpush1.msra.mxu0 0.0
    %191 = vmatprep.mubr.f32.mxu0 0.0
    %192 = vmatmul.mubr.f32.gmra.mrb[0].mxu0 %v125
    %v193 = vpop.f32.mrb[0].mxu0
    %v194 = vadd.f32 %v121, %v193
    %v195 = vpop.f32.mrb[0].mxu0
    %196 = vdwg.mxu0
    %vm197 = vcmask 130048
    %198 = vst.msk [vmem:[#allocation2] sm:$0xff] %vm197, %v194
    // Predicated region
    $region22: #{classifier_forward.1} parent=1 // pred_check
      _
    $region23: #{classifier_forward.1} parent=1 // pred_check_branch
      %200 = sbr.rel (0) target = $region25
    $region24: #{classifier_forward.1} parent=1 // pred_region
      %s202 = ssub.s32 128, 128
      %203 = vsyncadd [#allocation3], %s202
      %s205 = sshll.u32 [#allocation2], 4
      %s206 = int_to_ptr.vmem [resolvable:$true] %s205
      %208 = dma.vmem_to_hbm [thread:$0]  %s206, 128, %s5, [#allocation3]
    $region25: #{classifier_forward.1} parent=1 // pred_fallthru
      _
    // Predicated region
    $region26: #{classifier_forward.1} parent=1 // pred_check
      _
    $region27: #{classifier_forward.1} parent=1 // pred_check_branch
      %210 = sbr.rel (0) target = $region29
    $region28: #{classifier_forward.1} parent=1 // pred_region
      %211 = dma.done [#allocation3], 128
    $region29: #{classifier_forward.1} parent=1 // pred_fallthru
      _
    %212 = vsyncpa [#allocation3], 1

</llo_original>
